<compile_context>
chip_gen: v7x
topology: tpu7x:2x2x1
jax: 0.10.0
libtpu: 0.0.40
codegen_flags: <defaults>
</compile_context>

<pallas_src>
import functools

import jax
import jax.numpy as jnp
from jax.experimental import pallas as pl
from jax.experimental.pallas import tpu as pltpu


def _round_up(x, m):
    return ((x + m - 1) // m) * m


def _largest_divisor_leq(n, cap):
    best = 1
    for f in range(1, min(n, cap) + 1):
        if n % f == 0:
            best = f
    return best


def _patch_embed_cls_kernel(x_ref, w_ref, b_ref, cls_ref, o_ref):
    """One grid step = F whole frames.

    x_ref:   (F, P, Kp)      bf16 im2col patches
    w_ref:   (Kp, Hp)        bf16 projection weight (resident across the grid)
    b_ref:   (1, Hp)         f32 bias (resident)
    cls_ref: (1, Hp)         f32 cls token (resident)
    o_ref:   (F, 1 + P, Hp)  output: row 0 = cls, rows 1.. = patch embeddings
    """
    f_count, num_patches, _ = x_ref.shape
    w = w_ref[...]
    bias = b_ref[...]
    cls_row = cls_ref[...].astype(o_ref.dtype)
    for f in range(f_count):  # static unroll, small (<= max_frames_per_block)
        acc = jnp.dot(x_ref[f], w, preferred_element_type=jnp.float32)
        o_ref[f, pl.ds(1, num_patches), :] = (acc + bias).astype(o_ref.dtype)
        o_ref[f, pl.ds(0, 1), :] = cls_row  # CLS prepended in-kernel (no concat)


def prepare_patch_embed_params(params, patch_size, num_channels):
    """One-time (per model) repack of the conv weight into a dense (Kp, Hp) bf16
    matrix plus (1, Hp) f32 bias / cls.  Run outside the per-step jit."""
    ph, pw = patch_size
    weight = params["proj_weight"]                       # (hidden, C, ph, pw)
    hidden = weight.shape[0]
    k = num_channels * ph * pw
    kp = _round_up(k, 128)
    hp = _round_up(hidden, 128)
    # K inner order (c, i, j) matches the conv weight layout and the im2col below.
    w = weight.reshape(hidden, k).T.astype(jnp.bfloat16)
    w = jnp.pad(w, ((0, kp - k), (0, hp - hidden)))
    b = params["proj_bias"].reshape(1, hidden).astype(jnp.float32)
    b = jnp.pad(b, ((0, 0), (0, hp - hidden)))
    cls = params["cls_token"].reshape(1, hidden).astype(jnp.float32)
    cls = jnp.pad(cls, ((0, 0), (0, hp - hidden)))
    return {"w_kh": w, "bias": b, "cls": cls}


@functools.partial(
    jax.jit,
    static_argnames=("patch_size", "hidden", "out_dtype", "max_frames_per_block"))
def beit_embeddings(pixel_values, w_kh, bias, cls, *, patch_size, hidden,
                    out_dtype=jnp.bfloat16, max_frames_per_block=4):
    """BeitEmbeddings.forward (default config: no mask/prompt/pos embeddings).

    pixel_values: (B, T, C, H, W) -> (B, T, 1 + num_patches, hidden)
    """
    B, T, C, H, W = pixel_values.shape
    ph, pw = patch_size
    nph, npw = H // ph, W // pw
    num_patches = nph * npw
    seq_len = num_patches + 1
    bt = B * T
    k = C * ph * pw
    kp, hp = w_kh.shape

    # ---- im2col patch extraction (single fused XLA transpose+cast pass) ----
    # (BT, C, nph, ph, npw, pw) -> (BT, nph, npw, C, ph, pw) -> (BT, P, K), bf16.
    # See TODO(synk) at top about folding this into the kernel DMA.
    x = pixel_values.reshape(bt, C, nph, ph, npw, pw).astype(jnp.bfloat16)
    x = jnp.transpose(x, (0, 2, 4, 1, 3, 5))
    x = x.reshape(bt, num_patches, k)
    if kp != k:  # only for toy configs; BEiT-base K=768 is already 128-aligned
        x = jnp.pad(x, ((0, 0), (0, 0), (0, kp - k)))

    frames = _largest_divisor_leq(bt, max_frames_per_block)
    grid = (bt // frames,)

    out_itemsize = jnp.dtype(out_dtype).itemsize
    cost = pl.CostEstimate(
        flops=2 * bt * num_patches * k * hidden,
        transcendentals=0,
        bytes_accessed=(x.size * x.dtype.itemsize
                        + w_kh.size * w_kh.dtype.itemsize
                        + bias.size * bias.dtype.itemsize
                        + cls.size * cls.dtype.itemsize
                        + bt * seq_len * hp * out_itemsize),
    )

    emb = pl.pallas_call(
        _patch_embed_cls_kernel,
        out_shape=jax.ShapeDtypeStruct((bt, seq_len, hp), out_dtype),
        grid_spec=pl.GridSpec(
            grid=grid,
            in_specs=[
                # F whole frames of patches stream per step (double-buffered DMA).
                pl.BlockSpec((frames, num_patches, kp), lambda i: (i, 0, 0)),
                # Constant index_map -> DMA'd once, stays resident in VMEM.
                pl.BlockSpec((kp, hp), lambda i: (0, 0)),
                pl.BlockSpec((1, hp), lambda i: (0, 0)),
                pl.BlockSpec((1, hp), lambda i: (0, 0)),
            ],
            out_specs=pl.BlockSpec((frames, seq_len, hp), lambda i: (i, 0, 0)),
        ),
        compiler_params=pltpu.CompilerParams(
            # Frame groups are independent -> shard across both TCs on v7x.
            dimension_semantics=("parallel",),
        ),
        cost_estimate=cost,
    )(x, w_kh, bias, cls)

    if hp != hidden:  # toy configs only; BEiT hidden sizes are 128-multiples
        emb = emb[..., :hidden]
    # TODO(synk): optional mask_token / prompt_tokens / absolute & temporal position
    # embeddings (disabled in the default BeitConfig) are plain adds/concats and are
    # omitted; dropout with p=0.0 is the identity.
    return emb.reshape(B, T, seq_len, hidden)


def reference_beit_embeddings(pixel_values, params, patch_size,
                              out_dtype=jnp.bfloat16):
    """Pure-JAX reference (conv stride=kernel=patch, bf16 inputs / f32 accum)."""
    B, T, C, H, W = pixel_values.shape
    ph, pw = patch_size
    x = pixel_values.reshape(B * T, C, H, W).astype(jnp.bfloat16)
    w = params["proj_weight"].astype(jnp.bfloat16)
    out = jax.lax.conv_general_dilated(
        x, w, window_strides=(ph, pw), padding="VALID",
        dimension_numbers=("NCHW", "OIHW", "NCHW"),
        preferred_element_type=jnp.float32,
    )
    out = out + params["proj_bias"].reshape(1, -1, 1, 1).astype(jnp.float32)
    bt, hid, gh, gw = out.shape
    out = jnp.transpose(out.reshape(bt, hid, gh * gw), (0, 2, 1)).astype(out_dtype)
    cls = jnp.broadcast_to(
        params["cls_token"].reshape(1, 1, hid).astype(out_dtype), (bt, 1, hid))
    out = jnp.concatenate([cls, out], axis=1)
    return out.reshape(B, T, gh * gw + 1, hid)


if __name__ == "__main__":
    # Small config consistent with the module:
    #   batch=2, frames=2, num_channels=3, image_size=16, patch_size=8, hidden=32
    B, T, C, IMG, P, HID = 2, 2, 3, 16, 8, 32

    key = jax.random.PRNGKey(0)
    k_x, k_w, k_b, k_c = jax.random.split(key, 4)

    pixel_values = jax.random.normal(k_x, (B, T, C, IMG, IMG), dtype=jnp.float32)
    weight = jax.random.normal(k_w, (HID, C, P, P), dtype=jnp.float32) * 0.02
    bias = jax.random.normal(k_b, (HID,), dtype=jnp.float32) * 0.02
    cls_token = jax.random.normal(k_c, (1, 1, HID), dtype=jnp.float32) * 0.02

    params = dict(proj_weight=weight, proj_bias=bias, cls_token=cls_token)
    prepared = prepare_patch_embed_params(params, (P, P), C)  # one-time repack

    out = beit_embeddings(pixel_values, prepared["w_kh"], prepared["bias"],
                          prepared["cls"], patch_size=(P, P), hidden=HID)
    out = jax.block_until_ready(out)

    ref = reference_beit_embeddings(pixel_values, params, (P, P))
    num_patches = (IMG // P) * (IMG // P)
    assert out.shape == (B, T, num_patches + 1, HID), out.shape
    assert out.dtype == jnp.bfloat16, out.dtype
    max_err = float(jnp.max(jnp.abs(out.astype(jnp.float32)
                                    - ref.astype(jnp.float32))))
    assert max_err <= 2e-2, max_err

    print("KERNEL_OK")
</pallas_src>

<mosaic_0001>
module attributes {stable_mosaic.version = 11 : i64} {
  func.func @_patch_embed_cls_kernel(%arg0: i32, %arg1: memref<4x4x256xbf16, #tpu.memory_space<vmem>>, %arg2: memref<256x128xbf16, #tpu.memory_space<vmem>>, %arg3: memref<1x128xf32, #tpu.memory_space<vmem>>, %arg4: memref<1x128xf32, #tpu.memory_space<vmem>>, %arg5: memref<4x5x128xbf16, #tpu.memory_space<vmem>>) attributes {dimension_semantics = [#tpu.dimension_semantics<parallel>], iteration_bounds = array<i64: 1>, scalar_prefetch = 0 : i64, scratch_operands = 0 : i64, tpu.core_type = #tpu.core_type<tc>, window_params = [{transform_indices = @transform_0, window_bounds = array<i64: 4, 4, 256>}, {pipeline_mode = #tpu.pipeline_mode<synchronous>, transform_indices = @transform_1, window_bounds = array<i64: 256, 128>}, {pipeline_mode = #tpu.pipeline_mode<synchronous>, transform_indices = @transform_2, window_bounds = array<i64: 1, 128>}, {pipeline_mode = #tpu.pipeline_mode<synchronous>, transform_indices = @transform_3, window_bounds = array<i64: 1, 128>}, {transform_indices = @transform_4, window_bounds = array<i64: 4, 5, 128>}]} {
    %c0 = arith.constant 0 : index
    %c0_0 = arith.constant 0 : index
    %0 = vector.load %arg2[%c0, %c0_0] : memref<256x128xbf16, #tpu.memory_space<vmem>>, vector<256x128xbf16>
    %c0_1 = arith.constant 0 : index
    %c0_2 = arith.constant 0 : index
    %1 = vector.load %arg3[%c0_1, %c0_2] : memref<1x128xf32, #tpu.memory_space<vmem>>, vector<1x128xf32>
    %c0_3 = arith.constant 0 : index
    %c0_4 = arith.constant 0 : index
    %2 = vector.load %arg4[%c0_3, %c0_4] : memref<1x128xf32, #tpu.memory_space<vmem>>, vector<1x128xf32>
    %3 = arith.truncf %2 : vector<1x128xf32> to vector<1x128xbf16>
    %c0_5 = arith.constant 0 : index
    %c0_6 = arith.constant 0 : index
    %c0_7 = arith.constant 0 : index
    %4 = vector.load %arg1[%c0_5, %c0_6, %c0_7] : memref<4x4x256xbf16, #tpu.memory_space<vmem>>, vector<1x4x256xbf16>
    %5 = vector.shape_cast %4 : vector<1x4x256xbf16> to vector<4x256xbf16>
    %cst = arith.constant dense<0.000000e+00> : vector<4x128xf32>
    %6 = tpu.matmul %5, %0, %cst {dimension_numbers = #tpu.dot_dimension_numbers<[1], [0], [0], [1], [0, 0, 1, 1], [], []>} : vector<4x256xbf16>, vector<256x128xbf16>, vector<4x128xf32> -> vector<4x128xf32>
    %7 = vector.broadcast %1 : vector<1x128xf32> to vector<4x128xf32>
    %8 = arith.addf %6, %7 : vector<4x128xf32>
    %9 = arith.truncf %8 : vector<4x128xf32> to vector<4x128xbf16>
    %c0_8 = arith.constant 0 : index
    %c1 = arith.constant 1 : index
    %c0_9 = arith.constant 0 : index
    %10 = vector.load %arg5[%c0_8, %c1, %c0_9] : memref<4x5x128xbf16, #tpu.memory_space<vmem>>, vector<1x4x128xbf16>
    %11 = vector.shape_cast %10 : vector<1x4x128xbf16> to vector<4x128xbf16>
    %12 = vector.shape_cast %9 : vector<4x128xbf16> to vector<1x4x128xbf16>
    tpu.vector_store %arg5[%c0_8, %c1, %c0_9], %12 {strides = array<i32>} : memref<4x5x128xbf16, #tpu.memory_space<vmem>>, vector<1x4x128xbf16>,
    %c0_10 = arith.constant 0 : index
    %c0_11 = arith.constant 0 : index
    %c0_12 = arith.constant 0 : index
    %13 = vector.load %arg5[%c0_10, %c0_11, %c0_12] : memref<4x5x128xbf16, #tpu.memory_space<vmem>>, vector<1x1x128xbf16>
    %14 = vector.shape_cast %13 : vector<1x1x128xbf16> to vector<1x128xbf16>
    %15 = vector.shape_cast %3 : vector<1x128xbf16> to vector<1x1x128xbf16>
    tpu.vector_store %arg5[%c0_10, %c0_11, %c0_12], %15 {strides = array<i32>} : memref<4x5x128xbf16, #tpu.memory_space<vmem>>, vector<1x1x128xbf16>,
    %c1_13 = arith.constant 1 : index
    %c0_14 = arith.constant 0 : index
    %c0_15 = arith.constant 0 : index
    %16 = vector.load %arg1[%c1_13, %c0_14, %c0_15] : memref<4x4x256xbf16, #tpu.memory_space<vmem>>, vector<1x4x256xbf16>
    %17 = vector.shape_cast %16 : vector<1x4x256xbf16> to vector<4x256xbf16>
    %cst_16 = arith.constant dense<0.000000e+00> : vector<4x128xf32>
    %18 = tpu.matmul %17, %0, %cst_16 {dimension_numbers = #tpu.dot_dimension_numbers<[1], [0], [0], [1], [0, 0, 1, 1], [], []>} : vector<4x256xbf16>, vector<256x128xbf16>, vector<4x128xf32> -> vector<4x128xf32>
    %19 = vector.broadcast %1 : vector<1x128xf32> to vector<4x128xf32>
    %20 = arith.addf %18, %19 : vector<4x128xf32>
    %21 = arith.truncf %20 : vector<4x128xf32> to vector<4x128xbf16>
    %c1_17 = arith.constant 1 : index
    %c1_18 = arith.constant 1 : index
    %c0_19 = arith.constant 0 : index
    %22 = vector.load %arg5[%c1_17, %c1_18, %c0_19] : memref<4x5x128xbf16, #tpu.memory_space<vmem>>, vector<1x4x128xbf16>
    %23 = vector.shape_cast %22 : vector<1x4x128xbf16> to vector<4x128xbf16>
    %24 = vector.shape_cast %21 : vector<4x128xbf16> to vector<1x4x128xbf16>
    tpu.vector_store %arg5[%c1_17, %c1_18, %c0_19], %24 {strides = array<i32>} : memref<4x5x128xbf16, #tpu.memory_space<vmem>>, vector<1x4x128xbf16>,
    %c1_20 = arith.constant 1 : index
    %c0_21 = arith.constant 0 : index
    %c0_22 = arith.constant 0 : index
    %25 = vector.load %arg5[%c1_20, %c0_21, %c0_22] : memref<4x5x128xbf16, #tpu.memory_space<vmem>>, vector<1x1x128xbf16>
    %26 = vector.shape_cast %25 : vector<1x1x128xbf16> to vector<1x128xbf16>
    %27 = vector.shape_cast %3 : vector<1x128xbf16> to vector<1x1x128xbf16>
    tpu.vector_store %arg5[%c1_20, %c0_21, %c0_22], %27 {strides = array<i32>} : memref<4x5x128xbf16, #tpu.memory_space<vmem>>, vector<1x1x128xbf16>,
    %c2 = arith.constant 2 : index
    %c0_23 = arith.constant 0 : index
    %c0_24 = arith.constant 0 : index
    %28 = vector.load %arg1[%c2, %c0_23, %c0_24] : memref<4x4x256xbf16, #tpu.memory_space<vmem>>, vector<1x4x256xbf16>
    %29 = vector.shape_cast %28 : vector<1x4x256xbf16> to vector<4x256xbf16>
    %cst_25 = arith.constant dense<0.000000e+00> : vector<4x128xf32>
    %30 = tpu.matmul %29, %0, %cst_25 {dimension_numbers = #tpu.dot_dimension_numbers<[1], [0], [0], [1], [0, 0, 1, 1], [], []>} : vector<4x256xbf16>, vector<256x128xbf16>, vector<4x128xf32> -> vector<4x128xf32>
    %31 = vector.broadcast %1 : vector<1x128xf32> to vector<4x128xf32>
    %32 = arith.addf %30, %31 : vector<4x128xf32>
    %33 = arith.truncf %32 : vector<4x128xf32> to vector<4x128xbf16>
    %c2_26 = arith.constant 2 : index
    %c1_27 = arith.constant 1 : index
    %c0_28 = arith.constant 0 : index
    %34 = vector.load %arg5[%c2_26, %c1_27, %c0_28] : memref<4x5x128xbf16, #tpu.memory_space<vmem>>, vector<1x4x128xbf16>
    %35 = vector.shape_cast %34 : vector<1x4x128xbf16> to vector<4x128xbf16>
    %36 = vector.shape_cast %33 : vector<4x128xbf16> to vector<1x4x128xbf16>
    tpu.vector_store %arg5[%c2_26, %c1_27, %c0_28], %36 {strides = array<i32>} : memref<4x5x128xbf16, #tpu.memory_space<vmem>>, vector<1x4x128xbf16>,
    %c2_29 = arith.constant 2 : index
    %c0_30 = arith.constant 0 : index
    %c0_31 = arith.constant 0 : index
    %37 = vector.load %arg5[%c2_29, %c0_30, %c0_31] : memref<4x5x128xbf16, #tpu.memory_space<vmem>>, vector<1x1x128xbf16>
    %38 = vector.shape_cast %37 : vector<1x1x128xbf16> to vector<1x128xbf16>
    %39 = vector.shape_cast %3 : vector<1x128xbf16> to vector<1x1x128xbf16>
    tpu.vector_store %arg5[%c2_29, %c0_30, %c0_31], %39 {strides = array<i32>} : memref<4x5x128xbf16, #tpu.memory_space<vmem>>, vector<1x1x128xbf16>,
    %c3 = arith.constant 3 : index
    %c0_32 = arith.constant 0 : index
    %c0_33 = arith.constant 0 : index
    %40 = vector.load %arg1[%c3, %c0_32, %c0_33] : memref<4x4x256xbf16, #tpu.memory_space<vmem>>, vector<1x4x256xbf16>
    %41 = vector.shape_cast %40 : vector<1x4x256xbf16> to vector<4x256xbf16>
    %cst_34 = arith.constant dense<0.000000e+00> : vector<4x128xf32>
    %42 = tpu.matmul %41, %0, %cst_34 {dimension_numbers = #tpu.dot_dimension_numbers<[1], [0], [0], [1], [0, 0, 1, 1], [], []>} : vector<4x256xbf16>, vector<256x128xbf16>, vector<4x128xf32> -> vector<4x128xf32>
    %43 = vector.broadcast %1 : vector<1x128xf32> to vector<4x128xf32>
    %44 = arith.addf %42, %43 : vector<4x128xf32>
    %45 = arith.truncf %44 : vector<4x128xf32> to vector<4x128xbf16>
    %c3_35 = arith.constant 3 : index
    %c1_36 = arith.constant 1 : index
    %c0_37 = arith.constant 0 : index
    %46 = vector.load %arg5[%c3_35, %c1_36, %c0_37] : memref<4x5x128xbf16, #tpu.memory_space<vmem>>, vector<1x4x128xbf16>
    %47 = vector.shape_cast %46 : vector<1x4x128xbf16> to vector<4x128xbf16>
    %48 = vector.shape_cast %45 : vector<4x128xbf16> to vector<1x4x128xbf16>
    tpu.vector_store %arg5[%c3_35, %c1_36, %c0_37], %48 {strides = array<i32>} : memref<4x5x128xbf16, #tpu.memory_space<vmem>>, vector<1x4x128xbf16>,
    %c3_38 = arith.constant 3 : index
    %c0_39 = arith.constant 0 : index
    %c0_40 = arith.constant 0 : index
    %49 = vector.load %arg5[%c3_38, %c0_39, %c0_40] : memref<4x5x128xbf16, #tpu.memory_space<vmem>>, vector<1x1x128xbf16>
    %50 = vector.shape_cast %49 : vector<1x1x128xbf16> to vector<1x128xbf16>
    %51 = vector.shape_cast %3 : vector<1x128xbf16> to vector<1x1x128xbf16>
    tpu.vector_store %arg5[%c3_38, %c0_39, %c0_40], %51 {strides = array<i32>} : memref<4x5x128xbf16, #tpu.memory_space<vmem>>, vector<1x1x128xbf16>,
    return
  }
  func.func @transform_0(%arg0: i32) -> (i32, i32, i32) {
    %c0_i32 = arith.constant 0 : i32
    %c0_i32_0 = arith.constant 0 : i32
    %c0_i32_1 = arith.constant 0 : i32
    return %arg0, %c0_i32, %c0_i32_0 : i32, i32, i32
  }
  func.func @transform_1(%arg0: i32) -> (i32, i32) {
    %c0_i32 = arith.constant 0 : i32
    %c0_i32_0 = arith.constant 0 : i32
    %c0_i32_1 = arith.constant 0 : i32
    return %c0_i32, %c0_i32_0 : i32, i32
  }
  func.func @transform_2(%arg0: i32) -> (i32, i32) {
    %c0_i32 = arith.constant 0 : i32
    %c0_i32_0 = arith.constant 0 : i32
    %c0_i32_1 = arith.constant 0 : i32
    return %c0_i32, %c0_i32_0 : i32, i32
  }
  func.func @transform_3(%arg0: i32) -> (i32, i32) {
    %c0_i32 = arith.constant 0 : i32
    %c0_i32_0 = arith.constant 0 : i32
    %c0_i32_1 = arith.constant 0 : i32
    return %c0_i32, %c0_i32_0 : i32, i32
  }
  func.func @transform_4(%arg0: i32) -> (i32, i32, i32) {
    %c0_i32 = arith.constant 0 : i32
    %c0_i32_0 = arith.constant 0 : i32
    %c0_i32_1 = arith.constant 0 : i32
    return %arg0, %c0_i32, %c0_i32_0 : i32, i32, i32
  }
}

</mosaic_0001>

<llo_original>
// kernel: beit_embeddings.1
$region0: #{beit_embeddings.1}
  #allocation0 [shape = 'u32[]', space=smem, size = 0x4, offset = 0x4, fixed_abs, tag = 'smem constant byte address 0x4 - core index']
  #allocation1 [shape = 'u32[144,128]{1,0:T(1,128)}', space=vmem, size = 0x12000, scoped, tag = 'internal scratch']
  %s0 = inlined_call_operand.vmem [shape: bf16[4,4,256], index: 0, kind: input, shape index: {}]
  %s1 = inlined_call_operand.vmem [shape: bf16[256,128], index: 1, kind: input, shape index: {}]
  %s2 = inlined_call_operand.vmem [shape: f32[1,128], index: 2, kind: input, shape index: {}]
  %s3 = inlined_call_operand.vmem [shape: f32[1,128], index: 3, kind: input, shape index: {}]
  %s4 = inlined_call_operand.vmem [shape: bf16[4,5,128], index: 4, kind: output, shape index: {}]
  %s5 = sld [smem:[#allocation0]]
  $region26: #{beit_embeddings.1} parent=0
    _
  %s7 = ssub.s32 1, %s5
  %s8 = scalar_select 0, %s7, %s5
  // Predicated region
  $region2: #{beit_embeddings.1} parent=0 // pred_check
    _
  $region3: #{beit_embeddings.1} parent=0 // pred_check_branch
    %10 = sbr.rel (0) target = $region5
  $region4: #{beit_embeddings.1} parent=0 // pred_region
    _
  $region5: #{beit_embeddings.1} parent=0 // pred_fallthru
    _
  // Predicated region
  $region6: #{beit_embeddings.1} parent=0 // pred_check
    _
  $region7: #{beit_embeddings.1} parent=0 // pred_check_branch
    %12 = sbr.rel (0) target = $region9
  $region8: #{beit_embeddings.1} parent=0 // pred_region
    _
  $region9: #{beit_embeddings.1} parent=0 // pred_fallthru
    _
  // Predicated region
  $region10: #{beit_embeddings.1} parent=0 // pred_check
    _
  $region11: #{beit_embeddings.1} parent=0 // pred_check_branch
    %14 = sbr.rel (0) target = $region13
  $region12: #{beit_embeddings.1} parent=0 // pred_region
    _
  $region13: #{beit_embeddings.1} parent=0 // pred_fallthru
    _
  // Predicated region
  $region14: #{beit_embeddings.1} parent=0 // pred_check
    _
  $region15: #{beit_embeddings.1} parent=0 // pred_check_branch
    %16 = sbr.rel (0) target = $region17
  $region16: #{beit_embeddings.1} parent=0 // pred_region
    _
  $region17: #{beit_embeddings.1} parent=0 // pred_fallthru
    _
  %v18 = vld [vmem:[%s1] sm:$0xf]
  %v19 = vld [vmem:[%s1 + $0x4] sm:$0xf]
  %v20 = vld [vmem:[%s1 + $0x8] sm:$0xf]
  %v21 = vld [vmem:[%s1 + $0xc] sm:$0xf]
  %v22 = vld [vmem:[%s1 + $0x10] sm:$0xf]
  %v23 = vld [vmem:[%s1 + $0x14] sm:$0xf]
  %v24 = vld [vmem:[%s1 + $0x18] sm:$0xf]
  %v25 = vld [vmem:[%s1 + $0x1c] sm:$0xf]
  %v26 = vld [vmem:[%s1 + $0x20] sm:$0xf]
  %v27 = vld [vmem:[%s1 + $0x24] sm:$0xf]
  %v28 = vld [vmem:[%s1 + $0x28] sm:$0xf]
  %v29 = vld [vmem:[%s1 + $0x2c] sm:$0xf]
  %v30 = vld [vmem:[%s1 + $0x30] sm:$0xf]
  %v31 = vld [vmem:[%s1 + $0x34] sm:$0xf]
  %v32 = vld [vmem:[%s1 + $0x38] sm:$0xf]
  %v33 = vld [vmem:[%s1 + $0x3c] sm:$0xf]
  %v34 = vld [vmem:[%s1 + $0x40] sm:$0xf]
  %v35 = vld [vmem:[%s1 + $0x44] sm:$0xf]
  %v36 = vld [vmem:[%s1 + $0x48] sm:$0xf]
  %v37 = vld [vmem:[%s1 + $0x4c] sm:$0xf]
  %v38 = vld [vmem:[%s1 + $0x50] sm:$0xf]
  %v39 = vld [vmem:[%s1 + $0x54] sm:$0xf]
  %v40 = vld [vmem:[%s1 + $0x58] sm:$0xf]
  %v41 = vld [vmem:[%s1 + $0x5c] sm:$0xf]
  %v42 = vld [vmem:[%s1 + $0x60] sm:$0xf]
  %v43 = vld [vmem:[%s1 + $0x64] sm:$0xf]
  %v44 = vld [vmem:[%s1 + $0x68] sm:$0xf]
  %v45 = vld [vmem:[%s1 + $0x6c] sm:$0xf]
  %v46 = vld [vmem:[%s1 + $0x70] sm:$0xf]
  %v47 = vld [vmem:[%s1 + $0x74] sm:$0xf]
  %v48 = vld [vmem:[%s1 + $0x78] sm:$0xf]
  %v49 = vld [vmem:[%s1 + $0x7c] sm:$0xf]
  %v50 = vld [vmem:[%s2] sm:$0x1]
  %v51 = vld [vmem:[%s3] sm:$0x1]
  %v52 = vpack.c.bf16 %v51, %v51
  %v53 = vld [vmem:[%s0] sm:$0xf]
  %v55 = vlaneseq
  %v56 = vshrl.u32 %v55, 7
  %v57 = vsub.s32 0, %v56
  %v58 = vrot.slane %v50, %v57
  %v62 = vunpack.c.l.s4 1983009808
  %v63 = vunpack.c.0.s8 %v62
  %v64 = vlaneseq
  %v65 = vshrl.u32 %v64, 7
  %v66 = vsub.s32 %v63, %v65
  %v67 = vrot.slane %v53, %v66
  %v68 = vcombine.high %v67, %v67
  %v103 = vunpack.c.l.b16 %v18
  %v104 = vunpack.c.l.b16 %v19
  %v105 = vunpack.c.l.b16 %v20
  %v106 = vunpack.c.l.b16 %v21
  %v107 = vunpack.c.l.b16 %v22
  %v108 = vunpack.c.l.b16 %v23
  %v109 = vunpack.c.l.b16 %v24
  %v110 = vunpack.c.l.b16 %v25
  %v111 = vunpack.c.l.b16 %v26
  %v112 = vunpack.c.l.b16 %v27
  %v113 = vunpack.c.l.b16 %v28
  %v114 = vunpack.c.l.b16 %v29
  %v115 = vunpack.c.l.b16 %v30
  %v116 = vunpack.c.l.b16 %v31
  %v117 = vunpack.c.l.b16 %v32
  %v118 = vunpack.c.l.b16 %v33
  %v119 = vunpack.c.l.b16 %v34
  %v120 = vunpack.c.l.b16 %v35
  %v121 = vunpack.c.l.b16 %v36
  %v122 = vunpack.c.l.b16 %v37
  %v123 = vunpack.c.l.b16 %v38
  %v124 = vunpack.c.l.b16 %v39
  %v125 = vunpack.c.l.b16 %v40
  %v126 = vunpack.c.l.b16 %v41
  %v127 = vunpack.c.l.b16 %v42
  %v128 = vunpack.c.l.b16 %v43
  %v129 = vunpack.c.l.b16 %v44
  %v130 = vunpack.c.l.b16 %v45
  %v131 = vunpack.c.l.b16 %v46
  %v132 = vunpack.c.l.b16 %v47
  %v133 = vunpack.c.l.b16 %v48
  %v134 = vunpack.c.l.b16 %v49
  %v135 = vpack.c.b16 %v104, %v103
  %v136 = vpack.c.b16 %v106, %v105
  %v137 = vpack.c.b16 %v108, %v107
  %v138 = vpack.c.b16 %v110, %v109
  %v139 = vpack.c.b16 %v112, %v111
  %v140 = vpack.c.b16 %v114, %v113
  %v141 = vpack.c.b16 %v116, %v115
  %v142 = vpack.c.b16 %v118, %v117
  %v143 = vpack.c.b16 %v120, %v119
  %v144 = vpack.c.b16 %v122, %v121
  %v145 = vpack.c.b16 %v124, %v123
  %v146 = vpack.c.b16 %v126, %v125
  %v147 = vpack.c.b16 %v128, %v127
  %v148 = vpack.c.b16 %v130, %v129
  %v149 = vpack.c.b16 %v132, %v131
  %v150 = vpack.c.b16 %v134, %v133
  %167 = vmatprep.subr.bf16.mxu0 0
  %168 = vmatpush1.bf16.msra.mxu0 %v135
  %169 = vmatprep.subr.bf16.mxu0 0
  %170 = vmatpush1.bf16.msra.mxu0 %v136
  %171 = vmatprep.subr.bf16.mxu0 0
  %172 = vmatpush1.bf16.msra.mxu0 %v137
  %173 = vmatprep.subr.bf16.mxu0 0
  %174 = vmatpush1.bf16.msra.mxu0 %v138
  %175 = vmatprep.subr.bf16.mxu0 0
  %176 = vmatpush1.bf16.msra.mxu0 %v139
  %177 = vmatprep.subr.bf16.mxu0 0
  %178 = vmatpush1.bf16.msra.mxu0 %v140
  %179 = vmatprep.subr.bf16.mxu0 0
  %180 = vmatpush1.bf16.msra.mxu0 %v141
  %181 = vmatprep.subr.bf16.mxu0 0
  %182 = vmatpush1.bf16.msra.mxu0 %v142
  %183 = vmatprep.subr.bf16.mxu0 0
  %184 = vmatpush1.bf16.msra.mxu0 %v143
  %185 = vmatprep.subr.bf16.mxu0 0
  %186 = vmatpush1.bf16.msra.mxu0 %v144
  %187 = vmatprep.subr.bf16.mxu0 0
  %188 = vmatpush1.bf16.msra.mxu0 %v145
  %189 = vmatprep.subr.bf16.mxu0 0
  %190 = vmatpush1.bf16.msra.mxu0 %v146
  %191 = vmatprep.subr.bf16.mxu0 0
  %192 = vmatpush1.bf16.msra.mxu0 %v147
  %193 = vmatprep.subr.bf16.mxu0 0
  %194 = vmatpush1.bf16.msra.mxu0 %v148
  %195 = vmatprep.subr.bf16.mxu0 0
  %196 = vmatpush1.bf16.msra.mxu0 %v149
  %197 = vmatprep.subr.bf16.mxu0 0
  %198 = vmatpush1.bf16.msra.mxu0 %v150
  %199 = vmatprep.mubr.bf16.mxu0 %v68
  %200 = vmatmul.mubr.bf16.gmra.mrb[0].mxu0 %v67
  %v201 = vpop.f32.mrb[0].mxu0
  %v202 = vadd.f32 %v58, %v201
  %v203 = vpop.f32.mrb[0].mxu0
  %v204 = vpop.f32.mrb[0].mxu0
  %v205 = vpop.f32.mrb[0].mxu0
  %206 = vdwg.mxu0
  %v207 = vpack.c.bf16 %v202, %v202
  %v209 = vunpack.c.l.b16 %v207
  %v210 = vpack.c.b16 %v209, %v209
  %v212 = vshrl.u32 %v210, 16
  %v214 = vrot.slane %v212, 7
  %v215 = vshll.u32 %v210, 16
  %v217 = vor.u32 %v214, %v215
  %vm219 = vcmask 1042432
  %vm220 = vsmask.f32 2306
  %vm221 = vmand %vm219, %vm220
  %v222 = vld [vmem:[%s4] sm:$0x7]
  %v223 = vsel %vm221, %v217, %v222
  %224 = vst [vmem:[%s4] sm:$0x7] %v223
  %vm225 = vcmask 1040384
  %vm226 = vsmask.f32 256
  %vm227 = vmand %vm225, %vm226
  %v228 = vld [vmem:[%s4] sm:$0x1]
  %v229 = vsel %vm227, %v52, %v228
  %230 = vst [vmem:[%s4] sm:$0x1] %v229
  %s231 = scalar_lea.vmem %s0, 4
  %v232 = vld [vmem:[%s231] sm:$0xf]
  %v235 = vunpack.c.l.s4 1983009808
  %v236 = vunpack.c.0.s8 %v235
  %v237 = vlaneseq
  %v238 = vshrl.u32 %v237, 7
  %v239 = vsub.s32 %v236, %v238
  %v240 = vrot.slane %v232, %v239
  %v241 = vcombine.high %v240, %v240
  %244 = vmatprep.subr.bf16.mxu0 0
  %245 = vmatpush1.bf16.msra.mxu0 %v135
  %246 = vmatprep.subr.bf16.mxu0 0
  %247 = vmatpush1.bf16.msra.mxu0 %v136
  %248 = vmatprep.subr.bf16.mxu0 0
  %249 = vmatpush1.bf16.msra.mxu0 %v137
  %250 = vmatprep.subr.bf16.mxu0 0
  %251 = vmatpush1.bf16.msra.mxu0 %v138
  %252 = vmatprep.subr.bf16.mxu0 0
  %253 = vmatpush1.bf16.msra.mxu0 %v139
  %254 = vmatprep.subr.bf16.mxu0 0
  %255 = vmatpush1.bf16.msra.mxu0 %v140
  %256 = vmatprep.subr.bf16.mxu0 0
  %257 = vmatpush1.bf16.msra.mxu0 %v141
  %258 = vmatprep.subr.bf16.mxu0 0
  %259 = vmatpush1.bf16.msra.mxu0 %v142
  %260 = vmatprep.subr.bf16.mxu0 0
  %261 = vmatpush1.bf16.msra.mxu0 %v143
  %262 = vmatprep.subr.bf16.mxu0 0
  %263 = vmatpush1.bf16.msra.mxu0 %v144
  %264 = vmatprep.subr.bf16.mxu0 0
  %265 = vmatpush1.bf16.msra.mxu0 %v145
  %266 = vmatprep.subr.bf16.mxu0 0
  %267 = vmatpush1.bf16.msra.mxu0 %v146
  %268 = vmatprep.subr.bf16.mxu0 0
  %269 = vmatpush1.bf16.msra.mxu0 %v147
  %270 = vmatprep.subr.bf16.mxu0 0
  %271 = vmatpush1.bf16.msra.mxu0 %v148
  %272 = vmatprep.subr.bf16.mxu0 0
  %273 = vmatpush1.bf16.msra.mxu0 %v149
  %274 = vmatprep.subr.bf16.mxu0 0
  %275 = vmatpush1.bf16.msra.mxu0 %v150
  %276 = vmatprep.mubr.bf16.mxu0 %v241
  %277 = vmatmul.mubr.bf16.gmra.mrb[0].mxu0 %v240
  %v278 = vpop.f32.mrb[0].mxu0
  %v279 = vadd.f32 %v58, %v278
  %v280 = vpop.f32.mrb[0].mxu0
  %v281 = vpop.f32.mrb[0].mxu0
  %v282 = vpop.f32.mrb[0].mxu0
  %283 = vdwg.mxu0
  %v284 = vpack.c.bf16 %v279, %v279
  %v286 = vunpack.c.l.b16 %v284
  %v287 = vpack.c.b16 %v286, %v286
  %v289 = vshrl.u32 %v287, 16
  %v291 = vrot.slane %v289, 7
  %v292 = vshll.u32 %v287, 16
  %v294 = vor.u32 %v291, %v292
  %s296 = scalar_lea.vmem %s4, 4
  %v297 = vld [vmem:[%s296] sm:$0x7]
  %v298 = vsel %vm221, %v294, %v297
  %299 = vst [vmem:[%s296] sm:$0x7] %v298
  %v300 = vld [vmem:[%s296] sm:$0x1]
  %v301 = vsel %vm227, %v52, %v300
  %302 = vst [vmem:[%s296] sm:$0x1] %v301
  %s303 = scalar_lea.vmem %s0, 8
  %v304 = vld [vmem:[%s303] sm:$0xf]
  %v307 = vunpack.c.l.s4 1983009808
  %v308 = vunpack.c.0.s8 %v307
  %v309 = vlaneseq
  %v310 = vshrl.u32 %v309, 7
  %v311 = vsub.s32 %v308, %v310
  %v312 = vrot.slane %v304, %v311
  %v313 = vcombine.high %v312, %v312
  %316 = vmatprep.subr.bf16.mxu0 0
  %317 = vmatpush1.bf16.msra.mxu0 %v135
  %318 = vmatprep.subr.bf16.mxu0 0
  %319 = vmatpush1.bf16.msra.mxu0 %v136
  %320 = vmatprep.subr.bf16.mxu0 0
  %321 = vmatpush1.bf16.msra.mxu0 %v137
  %322 = vmatprep.subr.bf16.mxu0 0
  %323 = vmatpush1.bf16.msra.mxu0 %v138
  %324 = vmatprep.subr.bf16.mxu0 0
  %325 = vmatpush1.bf16.msra.mxu0 %v139
  %326 = vmatprep.subr.bf16.mxu0 0
  %327 = vmatpush1.bf16.msra.mxu0 %v140
  %328 = vmatprep.subr.bf16.mxu0 0
  %329 = vmatpush1.bf16.msra.mxu0 %v141
  %330 = vmatprep.subr.bf16.mxu0 0
  %331 = vmatpush1.bf16.msra.mxu0 %v142
  %332 = vmatprep.subr.bf16.mxu0 0
  %333 = vmatpush1.bf16.msra.mxu0 %v143
  %334 = vmatprep.subr.bf16.mxu0 0
  %335 = vmatpush1.bf16.msra.mxu0 %v144
  %336 = vmatprep.subr.bf16.mxu0 0
  %337 = vmatpush1.bf16.msra.mxu0 %v145
  %338 = vmatprep.subr.bf16.mxu0 0
  %339 = vmatpush1.bf16.msra.mxu0 %v146
  %340 = vmatprep.subr.bf16.mxu0 0
  %341 = vmatpush1.bf16.msra.mxu0 %v147
  %342 = vmatprep.subr.bf16.mxu0 0
  %343 = vmatpush1.bf16.msra.mxu0 %v148
  %344 = vmatprep.subr.bf16.mxu0 0
  %345 = vmatpush1.bf16.msra.mxu0 %v149
  %346 = vmatprep.subr.bf16.mxu0 0
  %347 = vmatpush1.bf16.msra.mxu0 %v150
  %348 = vmatprep.mubr.bf16.mxu0 %v313
  %349 = vmatmul.mubr.bf16.gmra.mrb[0].mxu0 %v312
  %v350 = vpop.f32.mrb[0].mxu0
  %v351 = vadd.f32 %v58, %v350
  %v352 = vpop.f32.mrb[0].mxu0
  %v353 = vpop.f32.mrb[0].mxu0
  %v354 = vpop.f32.mrb[0].mxu0
  %355 = vdwg.mxu0
  %v356 = vpack.c.bf16 %v351, %v351
  %v358 = vunpack.c.l.b16 %v356
  %v359 = vpack.c.b16 %v358, %v358
  %v361 = vshrl.u32 %v359, 16
  %v363 = vrot.slane %v361, 7
  %v364 = vshll.u32 %v359, 16
  %v366 = vor.u32 %v363, %v364
  %s368 = scalar_lea.vmem %s4, 8
  %v369 = vld [vmem:[%s368] sm:$0x7]
  %v370 = vsel %vm221, %v366, %v369
  %371 = vst [vmem:[%s368] sm:$0x7] %v370
  %v372 = vld [vmem:[%s368] sm:$0x1]
  %v373 = vsel %vm227, %v52, %v372
  %374 = vst [vmem:[%s368] sm:$0x1] %v373
  %s375 = scalar_lea.vmem %s0, 12
  %v376 = vld [vmem:[%s375] sm:$0xf]
  %v379 = vunpack.c.l.s4 1983009808
  %v380 = vunpack.c.0.s8 %v379
  %v381 = vlaneseq
  %v382 = vshrl.u32 %v381, 7
  %v383 = vsub.s32 %v380, %v382
  %v384 = vrot.slane %v376, %v383
  %v385 = vcombine.high %v384, %v384
  %388 = vmatprep.subr.bf16.mxu0 0
  %389 = vmatpush1.bf16.msra.mxu0 %v135
  %390 = vmatprep.subr.bf16.mxu0 0
  %391 = vmatpush1.bf16.msra.mxu0 %v136
  %392 = vmatprep.subr.bf16.mxu0 0
  %393 = vmatpush1.bf16.msra.mxu0 %v137
  %394 = vmatprep.subr.bf16.mxu0 0
  %395 = vmatpush1.bf16.msra.mxu0 %v138
  %396 = vmatprep.subr.bf16.mxu0 0
  %397 = vmatpush1.bf16.msra.mxu0 %v139
  %398 = vmatprep.subr.bf16.mxu0 0
  %399 = vmatpush1.bf16.msra.mxu0 %v140
  %400 = vmatprep.subr.bf16.mxu0 0
  %401 = vmatpush1.bf16.msra.mxu0 %v141
  %402 = vmatprep.subr.bf16.mxu0 0
  %403 = vmatpush1.bf16.msra.mxu0 %v142
  %404 = vmatprep.subr.bf16.mxu0 0
  %405 = vmatpush1.bf16.msra.mxu0 %v143
  %406 = vmatprep.subr.bf16.mxu0 0
  %407 = vmatpush1.bf16.msra.mxu0 %v144
  %408 = vmatprep.subr.bf16.mxu0 0
  %409 = vmatpush1.bf16.msra.mxu0 %v145
  %410 = vmatprep.subr.bf16.mxu0 0
  %411 = vmatpush1.bf16.msra.mxu0 %v146
  %412 = vmatprep.subr.bf16.mxu0 0
  %413 = vmatpush1.bf16.msra.mxu0 %v147
  %414 = vmatprep.subr.bf16.mxu0 0
  %415 = vmatpush1.bf16.msra.mxu0 %v148
  %416 = vmatprep.subr.bf16.mxu0 0
  %417 = vmatpush1.bf16.msra.mxu0 %v149
  %418 = vmatprep.subr.bf16.mxu0 0
  %419 = vmatpush1.bf16.msra.mxu0 %v150
  %420 = vmatprep.mubr.bf16.mxu0 %v385
  %421 = vmatmul.mubr.bf16.gmra.mrb[0].mxu0 %v384
  %v422 = vpop.f32.mrb[0].mxu0
  %v423 = vadd.f32 %v58, %v422
  %v424 = vpop.f32.mrb[0].mxu0
  %v425 = vpop.f32.mrb[0].mxu0
  %v426 = vpop.f32.mrb[0].mxu0
  %427 = vdwg.mxu0
  %v428 = vpack.c.bf16 %v423, %v423
  %v430 = vunpack.c.l.b16 %v428
  %v431 = vpack.c.b16 %v430, %v430
  %v433 = vshrl.u32 %v431, 16
  %v435 = vrot.slane %v433, 7
  %v436 = vshll.u32 %v431, 16
  %v438 = vor.u32 %v435, %v436
  %s440 = scalar_lea.vmem %s4, 12
  %v441 = vld [vmem:[%s440] sm:$0x7]
  %v442 = vsel %vm221, %v438, %v441
  %443 = vst [vmem:[%s440] sm:$0x7] %v442
  %v444 = vld [vmem:[%s440] sm:$0x1]
  %v445 = vsel %vm227, %v52, %v444
  %446 = vst [vmem:[%s440] sm:$0x1] %v445
  // Predicated region
  $region18: #{beit_embeddings.1} parent=0 // pred_check
    _
  $region19: #{beit_embeddings.1} parent=0 // pred_check_branch
    %448 = sbr.rel (0) target = $region21
  $region20: #{beit_embeddings.1} parent=0 // pred_region
    _
  $region21: #{beit_embeddings.1} parent=0 // pred_fallthru
    _
  // Predicated region
  $region22: #{beit_embeddings.1} parent=0 // pred_check
    _
  $region23: #{beit_embeddings.1} parent=0 // pred_check_branch
    %450 = sbr.rel (0) target = $region25
  $region24: #{beit_embeddings.1} parent=0 // pred_region
    _
  $region25: #{beit_embeddings.1} parent=0 // pred_fallthru
    _

</llo_original>
